<compile_context>
chip_gen: v7x
topology: tpu7x:2x2x1
jax: 0.10.0
libtpu: 0.0.40
codegen_flags: <defaults>
</compile_context>

<pallas_src>
import functools

import jax
import jax.numpy as jnp
from jax import lax
from jax.experimental import pallas as pl
from jax.experimental.pallas import tpu as pltpu

BN_EPS = 1e-5
LANE = 128


def _round_up(x, m):
    return ((x + m - 1) // m) * m


def _cdiv(a, b):
    return (a + b - 1) // b


# ---------------------------------------------------------------------------
# Fused kernel: build the 4 shifted stride-2 views in VMEM, matmul against the
# repacked 3x3 weights, add bias, ReLU, emit bf16 activations + per-tile
# (sum, centered sum-of-squares) BN partial statistics.
# ---------------------------------------------------------------------------
def _conv_relu_stats_kernel(xb_ref, xh_ref, w_ref, b_ref, y_ref, st_ref, *,
                            tho, wo, kq, t_last, rem_rows, needs_mask):
    # xb_ref: (1, THO, Ws, KQ)   bf16  space-to-depth input rows for this tile
    # xh_ref: (1, 1,  Ws, KQ)    bf16  +1 halo row
    # w_ref:  (4, KQ, NOp)       bf16  repacked conv weights (one slab/quadrant)
    # b_ref:  (1, NOp)           f32   conv bias
    # y_ref:  (1, THO, Wo, NOp)  bf16  relu(conv(x) + b)
    # st_ref: (1, 1, 2, NOp)     f32   row0 = sum(y), row1 = sum((y - tile_mean)^2)
    body = xb_ref[0]                               # (THO, Ws, KQ)
    halo = xh_ref[0]                               # (1,  Ws, KQ)
    if tho > 1:
        hi = jnp.concatenate([body[1:], halo], axis=0)   # rows r+1
    else:
        hi = halo

    mt = tho * wo

    def view(rows, col0):                          # -> (MT, KQ)
        return rows[:, col0:col0 + wo, :].reshape(mt, kq)

    acc = jnp.dot(view(body, 0), w_ref[0], preferred_element_type=jnp.float32)
    acc += jnp.dot(view(body, 1), w_ref[1], preferred_element_type=jnp.float32)
    acc += jnp.dot(view(hi, 0), w_ref[2], preferred_element_type=jnp.float32)
    acc += jnp.dot(view(hi, 1), w_ref[3], preferred_element_type=jnp.float32)
    y = jnp.maximum(acc + b_ref[...], 0.0)         # (MT, NOp) f32

    # ---- per-tile BN partial statistics (centered -> numerically stable) ----
    if needs_mask:
        # Only the last Ho-tile of each image has invalid (padding) rows.
        t = pl.program_id(1)
        vrows = jnp.where(t == t_last, rem_rows, tho) * wo
        rid = lax.broadcasted_iota(jnp.int32, (mt, 1), 0)
        valid = rid < vrows
        ym = jnp.where(valid, y, 0.0)
        cnt = vrows.astype(jnp.float32)
        s = jnp.sum(ym, axis=0, keepdims=True)                 # (1, NOp)
        d = jnp.where(valid, y - s * (1.0 / cnt), 0.0)
    else:
        s = jnp.sum(y, axis=0, keepdims=True)                  # (1, NOp)
        d = y - s * (1.0 / float(mt))
    ssc = jnp.sum(d * d, axis=0, keepdims=True)                # (1, NOp)

    st_ref[0, 0, :, :] = jnp.concatenate([s, ssc], axis=0)     # (2, NOp)
    y_ref[...] = y.reshape(1, tho, wo, -1).astype(y_ref.dtype)


# ---------------------------------------------------------------------------
# Tile-height selection: biggest output-row tile that fits a VMEM budget,
# counting weight/bias/output blocks and in-kernel temporaries.
# ---------------------------------------------------------------------------
def _pick_tile_height(n, ho, wo, ws, kq, no_pad, vmem_budget):
    lane_kq = _round_up(kq, LANE)                      # VMEM lane padding
    per_row = (2 * _round_up(ws, 16) * lane_kq * 2     # xs body block (bf16, x2 buf)
               + 2 * wo * no_pad * 2                   # y output block (bf16, x2 buf)
               + wo * no_pad * 4                       # f32 accumulator
               + 4 * wo * lane_kq * 2)                 # 4 shifted views (bf16)
    fixed = (2 * 4 * kq * no_pad * 2                   # weight block (x2 buf)
             + 2 * 8 * no_pad * 4                      # bias block
             + 2 * 8 * no_pad * 4                      # stats block
             + 2 * _round_up(ws, 16) * lane_kq * 2     # halo block
             + (1 << 20))                              # slack
    cap = max(1, (vmem_budget - fixed) // per_row)
    # ~1024 output rows per tile is already ~85% of HBM roofline; no need more.
    tho = int(min(cap, ho, max(1, _cdiv(1024, wo))))
    # v7x has 2 TensorCores per chip: make sure the grid has >= 2 steps.
    if n * _cdiv(ho, tho) < 2 and ho >= 2:
        tho = _cdiv(ho, 2)
    # Prefer a tile height dividing Ho (no last-tile masking), within 2x.
    for d in range(tho, 0, -1):
        if ho % d == 0 and 2 * d > tho:
            return d
    return tho


# ---------------------------------------------------------------------------
# Forward
# ---------------------------------------------------------------------------
def conv_block_forward(x, weight, bias, gamma, beta, *,
                       vmem_limit_bytes=32 * 1024 * 1024):
    """x: (N, ni, H, W) f32 NCHW; weight: (no, ni, 3, 3); bias/gamma/beta: (no,).
    Returns bn(relu(conv3x3_s2_p1(x))) in NCHW f32 (training-mode batch stats)."""
    n, c, h, w = x.shape
    no = weight.shape[0]

    ho = (h + 2 - 3) // 2 + 1
    wo = (w + 2 - 3) // 2 + 1
    ws = wo + 1
    cp = _round_up(c, 4)            # KQ = 4*cp stays 16-aligned (bf16 sublanes)
    kq = 4 * cp
    no_pad = _round_up(no, LANE)    # lane-dense output channels

    tho = _pick_tile_height(n, ho, wo, ws, kq, no_pad,
                            vmem_budget=(vmem_limit_bytes * 2) // 3)
    t_tiles = _cdiv(ho, tho)
    ho_pad = t_tiles * tho
    rem = ho - (t_tiles - 1) * tho
    needs_mask = (rem != tho)
    hs = ho_pad + 1                 # space-to-depth rows needed (incl. halo)

    # ---- repack x once: zero-pad + space-to-depth by the stride (bf16) ------
    # xs[n, i, j, (pi*2+pj)*cp + ci] = x_padded[n, 2i+pi, 2j+pj, ci]
    xpad = jnp.zeros((n, 2 * hs, 2 * ws, cp), jnp.float32)
    xpad = xpad.at[:, 1:1 + h, 1:1 + w, :c].set(jnp.transpose(x, (0, 2, 3, 1)))
    xs = xpad.reshape(n, hs, 2, ws, 2, cp)
    xs = jnp.transpose(xs, (0, 1, 3, 2, 4, 5)).reshape(n, hs, ws, kq)
    xs = xs.astype(jnp.bfloat16)

    # ---- repack the 3x3 weights to match: quadrant q=(di,dj), (kh,kw)=(2di+pi,
    #      2dj+pj); kh==3 / kw==3 / padded-channel slots are zero. ------------
    wk = jnp.zeros((4, 4, cp, no), jnp.float32)
    wk = wk.at[:3, :3, :c, :].set(jnp.transpose(weight, (2, 3, 1, 0)))
    wk = wk.reshape(2, 2, 2, 2, cp, no)              # (di, pi, dj, pj, ci, o)
    wk = jnp.transpose(wk, (0, 2, 1, 3, 4, 5))       # (di, dj, pi, pj, ci, o)
    wmat = jnp.pad(wk.reshape(4, kq, no),
                   ((0, 0), (0, 0), (0, no_pad - no))).astype(jnp.bfloat16)
    bvec = jnp.pad(bias.astype(jnp.float32), (0, no_pad - no)).reshape(1, no_pad)

    kernel = functools.partial(
        _conv_relu_stats_kernel, tho=tho, wo=wo, kq=kq,
        t_last=t_tiles - 1, rem_rows=rem, needs_mask=needs_mask)

    cost = pl.CostEstimate(
        flops=2 * n * t_tiles * tho * wo * 4 * kq * no_pad,
        transcendentals=0,
        bytes_accessed=(xs.size * 2 + wmat.size * 2 + bvec.size * 4
                        + n * ho_pad * wo * no_pad * 2
                        + n * t_tiles * 2 * no_pad * 4))

    y, stats = pl.pallas_call(
        kernel,
        grid=(n, t_tiles),
        in_specs=[
            pl.BlockSpec((1, tho, ws, kq), lambda i, t: (i, t, 0, 0)),
            pl.BlockSpec((1, 1, ws, kq), lambda i, t: (i, (t + 1) * tho, 0, 0)),
            pl.BlockSpec((4, kq, no_pad), lambda i, t: (0, 0, 0)),
            pl.BlockSpec((1, no_pad), lambda i, t: (0, 0)),
        ],
        out_specs=[
            pl.BlockSpec((1, tho, wo, no_pad), lambda i, t: (i, t, 0, 0)),
            pl.BlockSpec((1, 1, 2, no_pad), lambda i, t: (i, t, 0, 0)),
        ],
        out_shape=[
            jax.ShapeDtypeStruct((n, ho_pad, wo, no_pad), jnp.bfloat16),
            jax.ShapeDtypeStruct((n, t_tiles, 2, no_pad), jnp.float32),
        ],
        compiler_params=pltpu.CompilerParams(
            dimension_semantics=("parallel", "parallel"),
            vmem_limit_bytes=vmem_limit_bytes),
        cost_estimate=cost,
    )(xs, xs, wmat, bvec)

    # ---- finalize BN statistics on tiny (N, T, no) arrays (Chan merge) ------
    s_t = stats[:, :, 0, :no]
    ssc_t = stats[:, :, 1, :no]
    if needs_mask:
        cnt_list = [tho * wo] * (t_tiles - 1) + [rem * wo]
    else:
        cnt_list = [tho * wo] * t_tiles
    cnt = jnp.asarray(cnt_list, jnp.float32).reshape(1, t_tiles, 1)
    m_total = float(n * ho * wo)
    mean_t = s_t / cnt
    mean = jnp.sum(s_t, axis=(0, 1)) / m_total
    ss_tot = (jnp.sum(ssc_t, axis=(0, 1))
              + jnp.sum(cnt * (mean_t - mean) ** 2, axis=(0, 1)))
    var = ss_tot / m_total                     # biased, as BN training uses
    inv = lax.rsqrt(var + BN_EPS)
    scale = gamma.astype(jnp.float32) * inv
    shift = beta.astype(jnp.float32) - mean * scale

    # ---- epilogue: affine + NCHW relayout, fused by XLA into one copy -------
    out = y[:, :ho, :, :no].astype(jnp.float32) * scale + shift
    return jnp.transpose(out, (0, 3, 1, 2))


def reference_forward(x, weight, bias, gamma, beta, *, stride=2, pad=1):
    """Pure-JAX f32 reference (same semantics) for a correctness check."""
    y = lax.conv_general_dilated(
        x, weight, window_strides=(stride, stride),
        padding=[(pad, pad), (pad, pad)],
        dimension_numbers=("NCHW", "OIHW", "NCHW"))
    y = y + bias[None, :, None, None]
    y = jnp.maximum(y, 0.0)
    mean = jnp.mean(y, axis=(0, 2, 3), keepdims=True)
    var = jnp.mean((y - mean) ** 2, axis=(0, 2, 3), keepdims=True)
    y = (y - mean) * lax.rsqrt(var + BN_EPS)
    return y * gamma[None, :, None, None] + beta[None, :, None, None]


if __name__ == "__main__":
    key = jax.random.PRNGKey(0)
    kx, kw, kb = jax.random.split(key, 3)

    # Small shapes: N=2, ni=4, no=8, H=W=16  ->  output (2, 8, 8, 8)
    N, NI, NO, H, W = 2, 4, 8, 16, 16
    x = jax.random.normal(kx, (N, NI, H, W), dtype=jnp.float32)

    # Deterministic parameter init (shapes per nn.Conv2d / nn.BatchNorm2d)
    fan_in = NI * 3 * 3
    bound = 1.0 / (fan_in ** 0.5)
    weight = jax.random.uniform(kw, (NO, NI, 3, 3), jnp.float32, -bound, bound)
    bias = jax.random.uniform(kb, (NO,), jnp.float32, -bound, bound)
    gamma = jnp.ones((NO,), jnp.float32)
    beta = jnp.zeros((NO,), jnp.float32)

    fwd = jax.jit(conv_block_forward)
    out = jax.block_until_ready(fwd(x, weight, bias, gamma, beta))

    ref = reference_forward(x, weight, bias, gamma, beta)
    assert out.shape == (N, NO, H // 2, W // 2), out.shape
    # bf16 MXU inputs + bf16 intermediate -> loose tolerance vs f32 reference.
    err = float(jnp.max(jnp.abs(out - ref)))
    assert err < 5e-2, "mismatch vs reference, max abs diff = %f" % err

    print("KERNEL_OK")
</pallas_src>

<mosaic_0001>
module attributes {stable_mosaic.version = 11 : i64} {
  func.func @_conv_relu_stats_kernel(%arg0: i32, %arg1: i32, %arg2: memref<1x8x9x16xbf16, #tpu.memory_space<vmem>>, %arg3: memref<1x1x9x16xbf16, #tpu.memory_space<vmem>>, %arg4: memref<4x16x128xbf16, #tpu.memory_space<vmem>>, %arg5: memref<1x128xf32, #tpu.memory_space<vmem>>, %arg6: memref<1x8x8x128xbf16, #tpu.memory_space<vmem>>, %arg7: memref<1x1x2x128xf32, #tpu.memory_space<vmem>>) attributes {dimension_semantics = [#tpu.dimension_semantics<parallel>, #tpu.dimension_semantics<parallel>], iteration_bounds = array<i64: 2, 1>, scalar_prefetch = 0 : i64, scratch_operands = 0 : i64, tpu.core_type = #tpu.core_type<tc>, window_params = [{transform_indices = @transform_0, window_bounds = array<i64: 1, 8, 9, 16>}, {transform_indices = @transform_1, window_bounds = array<i64: 1, 1, 9, 16>}, {pipeline_mode = #tpu.pipeline_mode<synchronous>, transform_indices = @transform_2, window_bounds = array<i64: 4, 16, 128>}, {pipeline_mode = #tpu.pipeline_mode<synchronous>, transform_indices = @transform_3, window_bounds = array<i64: 1, 128>}, {transform_indices = @transform_4, window_bounds = array<i64: 1, 8, 8, 128>}, {transform_indices = @transform_5, window_bounds = array<i64: 1, 1, 2, 128>}]} {
    %c0 = arith.constant 0 : index
    %c0_0 = arith.constant 0 : index
    %c0_1 = arith.constant 0 : index
    %c0_2 = arith.constant 0 : index
    %0 = vector.load %arg2[%c0, %c0_0, %c0_1, %c0_2] : memref<1x8x9x16xbf16, #tpu.memory_space<vmem>>, vector<1x8x9x16xbf16>
    %1 = vector.shape_cast %0 : vector<1x8x9x16xbf16> to vector<8x9x16xbf16>
    %c0_3 = arith.constant 0 : index
    %c0_4 = arith.constant 0 : index
    %c0_5 = arith.constant 0 : index
    %c0_6 = arith.constant 0 : index
    %2 = vector.load %arg3[%c0_3, %c0_4, %c0_5, %c0_6] : memref<1x1x9x16xbf16, #tpu.memory_space<vmem>>, vector<1x1x9x16xbf16>
    %3 = vector.shape_cast %2 : vector<1x1x9x16xbf16> to vector<1x9x16xbf16>
    %4 = vector.extract_strided_slice %1 {offsets = [1, 0, 0], sizes = [7, 9, 16], strides = [1, 1, 1]} : vector<8x9x16xbf16> to vector<7x9x16xbf16>
    %5 = tpu.concatenate %4, %3 in 0 : vector<7x9x16xbf16>, vector<1x9x16xbf16> -> vector<8x9x16xbf16>
    %6 = vector.extract_strided_slice %1 {offsets = [0, 0, 0], sizes = [8, 8, 16], strides = [1, 1, 1]} : vector<8x9x16xbf16> to vector<8x8x16xbf16>
    %7 = vector.shape_cast %6 : vector<8x8x16xbf16> to vector<64x16xbf16>
    %c0_7 = arith.constant 0 : index
    %c0_8 = arith.constant 0 : index
    %c0_9 = arith.constant 0 : index
    %8 = vector.load %arg4[%c0_7, %c0_8, %c0_9] : memref<4x16x128xbf16, #tpu.memory_space<vmem>>, vector<1x16x128xbf16>
    %9 = vector.shape_cast %8 : vector<1x16x128xbf16> to vector<16x128xbf16>
    %cst = arith.constant dense<0.000000e+00> : vector<64x128xf32>
    %10 = tpu.matmul %7, %9, %cst {dimension_numbers = #tpu.dot_dimension_numbers<[1], [0], [0], [1], [0, 0, 1, 1], [], []>} : vector<64x16xbf16>, vector<16x128xbf16>, vector<64x128xf32> -> vector<64x128xf32>
    %11 = vector.extract_strided_slice %1 {offsets = [0, 1, 0], sizes = [8, 8, 16], strides = [1, 1, 1]} : vector<8x9x16xbf16> to vector<8x8x16xbf16>
    %12 = vector.shape_cast %11 : vector<8x8x16xbf16> to vector<64x16xbf16>
    %c1 = arith.constant 1 : index
    %c0_10 = arith.constant 0 : index
    %c0_11 = arith.constant 0 : index
    %13 = vector.load %arg4[%c1, %c0_10, %c0_11] : memref<4x16x128xbf16, #tpu.memory_space<vmem>>, vector<1x16x128xbf16>
    %14 = vector.shape_cast %13 : vector<1x16x128xbf16> to vector<16x128xbf16>
    %cst_12 = arith.constant dense<0.000000e+00> : vector<64x128xf32>
    %15 = tpu.matmul %12, %14, %cst_12 {dimension_numbers = #tpu.dot_dimension_numbers<[1], [0], [0], [1], [0, 0, 1, 1], [], []>} : vector<64x16xbf16>, vector<16x128xbf16>, vector<64x128xf32> -> vector<64x128xf32>
    %16 = arith.addf %10, %15 : vector<64x128xf32>
    %17 = vector.extract_strided_slice %5 {offsets = [0, 0, 0], sizes = [8, 8, 16], strides = [1, 1, 1]} : vector<8x9x16xbf16> to vector<8x8x16xbf16>
    %18 = vector.shape_cast %17 : vector<8x8x16xbf16> to vector<64x16xbf16>
    %c2 = arith.constant 2 : index
    %c0_13 = arith.constant 0 : index
    %c0_14 = arith.constant 0 : index
    %19 = vector.load %arg4[%c2, %c0_13, %c0_14] : memref<4x16x128xbf16, #tpu.memory_space<vmem>>, vector<1x16x128xbf16>
    %20 = vector.shape_cast %19 : vector<1x16x128xbf16> to vector<16x128xbf16>
    %cst_15 = arith.constant dense<0.000000e+00> : vector<64x128xf32>
    %21 = tpu.matmul %18, %20, %cst_15 {dimension_numbers = #tpu.dot_dimension_numbers<[1], [0], [0], [1], [0, 0, 1, 1], [], []>} : vector<64x16xbf16>, vector<16x128xbf16>, vector<64x128xf32> -> vector<64x128xf32>
    %22 = arith.addf %16, %21 : vector<64x128xf32>
    %23 = vector.extract_strided_slice %5 {offsets = [0, 1, 0], sizes = [8, 8, 16], strides = [1, 1, 1]} : vector<8x9x16xbf16> to vector<8x8x16xbf16>
    %24 = vector.shape_cast %23 : vector<8x8x16xbf16> to vector<64x16xbf16>
    %c3 = arith.constant 3 : index
    %c0_16 = arith.constant 0 : index
    %c0_17 = arith.constant 0 : index
    %25 = vector.load %arg4[%c3, %c0_16, %c0_17] : memref<4x16x128xbf16, #tpu.memory_space<vmem>>, vector<1x16x128xbf16>
    %26 = vector.shape_cast %25 : vector<1x16x128xbf16> to vector<16x128xbf16>
    %cst_18 = arith.constant dense<0.000000e+00> : vector<64x128xf32>
    %27 = tpu.matmul %24, %26, %cst_18 {dimension_numbers = #tpu.dot_dimension_numbers<[1], [0], [0], [1], [0, 0, 1, 1], [], []>} : vector<64x16xbf16>, vector<16x128xbf16>, vector<64x128xf32> -> vector<64x128xf32>
    %28 = arith.addf %22, %27 : vector<64x128xf32>
    %c0_19 = arith.constant 0 : index
    %c0_20 = arith.constant 0 : index
    %29 = vector.load %arg5[%c0_19, %c0_20] : memref<1x128xf32, #tpu.memory_space<vmem>>, vector<1x128xf32>
    %30 = vector.broadcast %29 : vector<1x128xf32> to vector<64x128xf32>
    %31 = arith.addf %28, %30 : vector<64x128xf32>
    %cst_21 = arith.constant 0.000000e+00 : f32
    %32 = vector.broadcast %cst_21 : f32 to vector<64x128xf32>
    %33 = arith.maximumf %31, %32 : vector<64x128xf32>
    %cst_22 = arith.constant dense<0.000000e+00> : vector<128xf32>
    %34 = vector.multi_reduction <add>, %33, %cst_22 [0] : vector<64x128xf32> to vector<128xf32>
    %35 = vector.shape_cast %34 : vector<128xf32> to vector<1x128xf32>
    %cst_23 = arith.constant 1.562500e-02 : f32
    %36 = vector.broadcast %cst_23 : f32 to vector<1x128xf32>
    %37 = arith.mulf %35, %36 : vector<1x128xf32>
    %38 = vector.broadcast %37 : vector<1x128xf32> to vector<64x128xf32>
    %39 = arith.subf %33, %38 : vector<64x128xf32>
    %40 = arith.mulf %39, %39 : vector<64x128xf32>
    %cst_24 = arith.constant dense<0.000000e+00> : vector<128xf32>
    %41 = vector.multi_reduction <add>, %40, %cst_24 [0] : vector<64x128xf32> to vector<128xf32>
    %42 = vector.shape_cast %41 : vector<128xf32> to vector<1x128xf32>
    %43 = tpu.concatenate %35, %42 in 0 : vector<1x128xf32>, vector<1x128xf32> -> vector<2x128xf32>
    %c0_25 = arith.constant 0 : index
    %c0_26 = arith.constant 0 : index
    %c0_27 = arith.constant 0 : index
    %c0_28 = arith.constant 0 : index
    %44 = vector.load %arg7[%c0_25, %c0_26, %c0_27, %c0_28] : memref<1x1x2x128xf32, #tpu.memory_space<vmem>>, vector<1x1x2x128xf32>
    %45 = vector.shape_cast %44 : vector<1x1x2x128xf32> to vector<2x128xf32>
    %46 = vector.shape_cast %43 : vector<2x128xf32> to vector<1x1x2x128xf32>
    tpu.vector_store %arg7[%c0_25, %c0_26, %c0_27, %c0_28], %46 {strides = array<i32>} : memref<1x1x2x128xf32, #tpu.memory_space<vmem>>, vector<1x1x2x128xf32>,
    %47 = vector.shape_cast %33 : vector<64x128xf32> to vector<1x8x8x128xf32>
    %48 = arith.truncf %47 : vector<1x8x8x128xf32> to vector<1x8x8x128xbf16>
    %c0_29 = arith.constant 0 : index
    %c0_30 = arith.constant 0 : index
    %c0_31 = arith.constant 0 : index
    %c0_32 = arith.constant 0 : index
    %49 = vector.load %arg6[%c0_29, %c0_30, %c0_31, %c0_32] : memref<1x8x8x128xbf16, #tpu.memory_space<vmem>>, vector<1x8x8x128xbf16>
    tpu.vector_store %arg6[%c0_29, %c0_30, %c0_31, %c0_32], %48 {strides = array<i32>} : memref<1x8x8x128xbf16, #tpu.memory_space<vmem>>, vector<1x8x8x128xbf16>,
    return
  }
  func.func @transform_0(%arg0: i32, %arg1: i32) -> (i32, i32, i32, i32) {
    %c0_i32 = arith.constant 0 : i32
    %c0_i32_0 = arith.constant 0 : i32
    %c0_i32_1 = arith.constant 0 : i32
    return %arg0, %arg1, %c0_i32, %c0_i32_0 : i32, i32, i32, i32
  }
  func.func @transform_1(%arg0: i32, %arg1: i32) -> (i32, i32, i32, i32) {
    %c1_i32 = arith.constant 1 : i32
    %0 = arith.addi %arg1, %c1_i32 : i32
    %c8_i32 = arith.constant 8 : i32
    %1 = arith.muli %0, %c8_i32 : i32
    %c0_i32 = arith.constant 0 : i32
    %c0_i32_0 = arith.constant 0 : i32
    %c0_i32_1 = arith.constant 0 : i32
    return %arg0, %1, %c0_i32, %c0_i32_0 : i32, i32, i32, i32
  }
  func.func @transform_2(%arg0: i32, %arg1: i32) -> (i32, i32, i32) {
    %c0_i32 = arith.constant 0 : i32
    %c0_i32_0 = arith.constant 0 : i32
    %c0_i32_1 = arith.constant 0 : i32
    %c0_i32_2 = arith.constant 0 : i32
    return %c0_i32, %c0_i32_0, %c0_i32_1 : i32, i32, i32
  }
  func.func @transform_3(%arg0: i32, %arg1: i32) -> (i32, i32) {
    %c0_i32 = arith.constant 0 : i32
    %c0_i32_0 = arith.constant 0 : i32
    %c0_i32_1 = arith.constant 0 : i32
    return %c0_i32, %c0_i32_0 : i32, i32
  }
  func.func @transform_4(%arg0: i32, %arg1: i32) -> (i32, i32, i32, i32) {
    %c0_i32 = arith.constant 0 : i32
    %c0_i32_0 = arith.constant 0 : i32
    %c0_i32_1 = arith.constant 0 : i32
    return %arg0, %arg1, %c0_i32, %c0_i32_0 : i32, i32, i32, i32
  }
  func.func @transform_5(%arg0: i32, %arg1: i32) -> (i32, i32, i32, i32) {
    %c0_i32 = arith.constant 0 : i32
    %c0_i32_0 = arith.constant 0 : i32
    %c0_i32_1 = arith.constant 0 : i32
    return %arg0, %arg1, %c0_i32, %c0_i32_0 : i32, i32, i32, i32
  }
}

</mosaic_0001>

<llo_original>
// kernel: conv_block_forward.1
$region0: #{conv_block_forward.1}
  #allocation0 [shape = 'u32[]', space=smem, size = 0x4, offset = 0x4, fixed_abs, tag = 'smem constant byte address 0x4 - core index']
  #allocation1 [shape = 'u32[144,128]{1,0:T(1,128)}', space=vmem, size = 0x12000, scoped, tag = 'internal scratch']
  %s0 = inlined_call_operand.vmem [shape: bf16[2,9,9,16], index: 0, kind: input, shape index: {}, may-alias: {0,1}]
  %s1 = inlined_call_operand.vmem [shape: bf16[2,9,9,16], index: 1, kind: input, shape index: {}, may-alias: {0,1}]
  %s2 = inlined_call_operand.vmem [shape: bf16[4,16,128], index: 2, kind: input, shape index: {}]
  %s3 = inlined_call_operand.vmem [shape: f32[1,128], index: 3, kind: input, shape index: {}]
  %s4 = inlined_call_operand.vmem [shape: bf16[2,8,8,128], index: 4, kind: output, shape index: {0}]
  %s5 = inlined_call_operand.vmem [shape: f32[2,1,2,128], index: 5, kind: output, shape index: {1}]
  %6 = xla_tuple %s4, %s5
  %s7 = sld [smem:[#allocation0]]
  $region57: #{conv_block_forward.1} parent=0
    _
  %s9 = ssub.s32 1, %s7
  %s10 = scalar_select 0, %s9, %s7
  loop: start=0, step=1, limit=4
  $region2: #{conv_block_forward.1} parent=0 // loop_pre_header
    _
  $region3: #{conv_block_forward.1} parent=0 // loop_header
    %s12 = sphi 0, %s16
    %p13 = scmp.ge.s32.totalorder %s12, 4
    %s19 = sphi 0, %s31
    %s20 = sphi 0, %s27
    %s21 = sphi 0, %s19
    %s22 = sphi 0, %s20
    %s23 = sphi 0, %s21
    %s24 = sphi 0, %s22
    %s36 = sphi 0, %s38
    %s39 = sphi 0, %s36
    %s40 = sphi 0, %s39
    %s56 = sphi 0, %s40
    %s68 = sphi 0, %s70
    %s71 = sphi 0, %s68
    %s72 = sphi 0, %s71
    %s88 = sphi 0, %s72
    %s92 = sphi 0, %s92
    %s94 = sphi 0, %s92
    %s95 = sphi 0, %s94
    %s109 = sphi 0, %s95
    %s113 = sphi 0, %s113
    %s115 = sphi 0, %s113
    %s116 = sphi 0, %s115
    %s130 = sphi 0, %s116
    %s138 = sphi 0, %s140
    %s141 = sphi 0, %s138
    %s142 = sphi 0, %s141
    %s158 = sphi 0, %s142
    %s166 = sphi 0, %s168
    %s169 = sphi 0, %s166
    %s170 = sphi 0, %s169
    %s186 = sphi 0, %s170
  $region4: #{conv_block_forward.1} parent=0 // loop_header_branch
    %15 = sbr.rel (%p13) target = $region8
  $region5: #{conv_block_forward.1} parent=0 // loop_body
    %s17 = ssub.s32 %s12, 1
    %s18 = ssub.s32 %s12, 2
    %s25 = sadd.s32 1, %s20
    %p26 = scmp.ge.s32.totalorder %s25, 1
    %s27 = scalar_select %p26, 0, %s25
    %s28 = sadd.s32 1, %s19
    %s29 = scalar_select %p26, %s28, %s19
    %p30 = scmp.ge.s32.totalorder %s29, 2
    %s31 = scalar_select %p30, 0, %s29
    %s32 = ssub.s32 %s19, %s31
    %s33 = ssub.s32 %s20, %s27
    %s34 = sor.u32 %s32, %s33
    %p35 = scmp.eq.s32.totalorder %s34, 0
    %s37 = sadd.s32 %s36, 1
    %s38 = scalar_select %p35, %s36, %s37
    %p41 = pneg %p35
    %p42 = scmp.eq.s32.totalorder %s12, 1
    %p43 = por %p41, %p42
    %p44 = scmp.ne.s32.totalorder %s36, %s39
    %p45 = scmp.eq.s32.totalorder %s12, 0
    %p46 = por %p44, %p45
    %p47 = scmp.ne.s32.totalorder %s36, %s39
    %p48 = scmp.eq.s32.totalorder %s17, 1
    %p49 = por %p47, %p48
    %p50 = scmp.ne.s32.totalorder %s39, %s40
    %p51 = scmp.eq.s32.totalorder %s17, 0
    %p52 = por %p50, %p51
    %p53 = scmp.ne.s32.totalorder %s39, %s40
    %p54 = scmp.eq.s32.totalorder %s18, 1
    %p55 = por %p53, %p54
    %p57 = scmp.ne.s32.totalorder %s40, %s56
    %p58 = scmp.eq.s32.totalorder %s18, 0
    %p59 = por %p57, %p58
    %s60 = sadd.s32 %s20, 1
    %s61 = smul.u32 %s60, 8
    %s62 = sadd.s32 %s27, 1
    %s63 = smul.u32 %s62, 8
    %s64 = ssub.s32 %s19, %s31
    %s65 = ssub.s32 %s61, %s63
    %s66 = sor.u32 %s64, %s65
    %p67 = scmp.eq.s32.totalorder %s66, 0
    %s69 = sadd.s32 %s68, 1
    %s70 = scalar_select %p67, %s68, %s69
    %p73 = pneg %p67
    %p74 = scmp.eq.s32.totalorder %s12, 1
    %p75 = por %p73, %p74
    %p76 = scmp.ne.s32.totalorder %s68, %s71
    %p77 = scmp.eq.s32.totalorder %s12, 0
    %p78 = por %p76, %p77
    %p79 = scmp.ne.s32.totalorder %s68, %s71
    %p80 = scmp.eq.s32.totalorder %s17, 1
    %p81 = por %p79, %p80
    %p82 = scmp.ne.s32.totalorder %s71, %s72
    %p83 = scmp.eq.s32.totalorder %s17, 0
    %p84 = por %p82, %p83
    %p85 = scmp.ne.s32.totalorder %s71, %s72
    %p86 = scmp.eq.s32.totalorder %s18, 1
    %p87 = por %p85, %p86
    %p89 = scmp.ne.s32.totalorder %s72, %s88
    %p90 = scmp.eq.s32.totalorder %s18, 0
    %p91 = por %p89, %p90
    %s93 = sadd.s32 %s92, 1
    %p96 = scmp.eq.s32.totalorder %s12, 1
    %p97 = scmp.ne.s32.totalorder %s92, %s94
    %p98 = scmp.eq.s32.totalorder %s12, 0
    %p99 = por %p97, %p98
    %p100 = scmp.ne.s32.totalorder %s92, %s94
    %p101 = scmp.eq.s32.totalorder %s17, 1
    %p102 = por %p100, %p101
    %p103 = scmp.ne.s32.totalorder %s94, %s95
    %p104 = scmp.eq.s32.totalorder %s17, 0
    %p105 = por %p103, %p104
    %p106 = scmp.ne.s32.totalorder %s94, %s95
    %p107 = scmp.eq.s32.totalorder %s18, 1
    %p108 = por %p106, %p107
    %p110 = scmp.ne.s32.totalorder %s95, %s109
    %p111 = scmp.eq.s32.totalorder %s18, 0
    %p112 = por %p110, %p111
    %s114 = sadd.s32 %s113, 1
    %p117 = scmp.eq.s32.totalorder %s12, 1
    %p118 = scmp.ne.s32.totalorder %s113, %s115
    %p119 = scmp.eq.s32.totalorder %s12, 0
    %p120 = por %p118, %p119
    %p121 = scmp.ne.s32.totalorder %s113, %s115
    %p122 = scmp.eq.s32.totalorder %s17, 1
    %p123 = por %p121, %p122
    %p124 = scmp.ne.s32.totalorder %s115, %s116
    %p125 = scmp.eq.s32.totalorder %s17, 0
    %p126 = por %p124, %p125
    %p127 = scmp.ne.s32.totalorder %s115, %s116
    %p128 = scmp.eq.s32.totalorder %s18, 1
    %p129 = por %p127, %p128
    %p131 = scmp.ne.s32.totalorder %s116, %s130
    %p132 = scmp.eq.s32.totalorder %s18, 0
    %p133 = por %p131, %p132
    %s134 = ssub.s32 %s19, %s31
    %s135 = ssub.s32 %s20, %s27
    %s136 = sor.u32 %s134, %s135
    %p137 = scmp.eq.s32.totalorder %s136, 0
    %s139 = sadd.s32 %s138, 1
    %s140 = scalar_select %p137, %s138, %s139
    %p143 = pneg %p137
    %p144 = scmp.eq.s32.totalorder %s12, 1
    %p145 = por %p143, %p144
    %p146 = scmp.ne.s32.totalorder %s138, %s141
    %p147 = scmp.eq.s32.totalorder %s12, 0
    %p148 = por %p146, %p147
    %p149 = scmp.ne.s32.totalorder %s138, %s141
    %p150 = scmp.eq.s32.totalorder %s17, 1
    %p151 = por %p149, %p150
    %p152 = scmp.ne.s32.totalorder %s141, %s142
    %p153 = scmp.eq.s32.totalorder %s17, 0
    %p154 = por %p152, %p153
    %p155 = scmp.ne.s32.totalorder %s141, %s142
    %p156 = scmp.eq.s32.totalorder %s18, 1
    %p157 = por %p155, %p156
    %p159 = scmp.ne.s32.totalorder %s142, %s158
    %p160 = scmp.eq.s32.totalorder %s18, 0
    %p161 = por %p159, %p160
    %s162 = ssub.s32 %s19, %s31
    %s163 = ssub.s32 %s20, %s27
    %s164 = sor.u32 %s162, %s163
    %p165 = scmp.eq.s32.totalorder %s164, 0
    %s167 = sadd.s32 %s166, 1
    %s168 = scalar_select %p165, %s166, %s167
    %p171 = pneg %p165
    %p172 = scmp.eq.s32.totalorder %s12, 1
    %p173 = por %p171, %p172
    %p174 = scmp.ne.s32.totalorder %s166, %s169
    %p175 = scmp.eq.s32.totalorder %s12, 0
    %p176 = por %p174, %p175
    %p177 = scmp.ne.s32.totalorder %s166, %s169
    %p178 = scmp.eq.s32.totalorder %s17, 1
    %p179 = por %p177, %p178
    %p180 = scmp.ne.s32.totalorder %s169, %s170
    %p181 = scmp.eq.s32.totalorder %s17, 0
    %p182 = por %p180, %p181
    %p183 = scmp.ne.s32.totalorder %s169, %s170
    %p184 = scmp.eq.s32.totalorder %s18, 1
    %p185 = por %p183, %p184
    %p187 = scmp.ne.s32.totalorder %s170, %s186
    %p188 = scmp.eq.s32.totalorder %s18, 0
    %p189 = por %p187, %p188
    %p190 = scmp.le.s32.totalorder 1, %s12
    %p191 = scmp.lt.s32.totalorder %s12, 3
    %p192 = pnand %p190, %p191
    %p193 = pneg %p192
    // Predicated region
    $region9: #{conv_block_forward.1} parent=5 // pred_check
      _
    $region10: #{conv_block_forward.1} parent=5 // pred_check_branch
      %195 = sbr.rel (%p192) target = $region12
    $region11: #{conv_block_forward.1} parent=5 // pred_region
      %s196 = ssub.s32 %s12, 1
      // Predicated region
      $region13: #{conv_block_forward.1} parent=11 // pred_check
        %p197 = pneg %p105
      $region14: #{conv_block_forward.1} parent=11 // pred_check_branch
        %199 = sbr.rel (%p197) target = $region16
      $region15: #{conv_block_forward.1} parent=11 // pred_region
        _
      $region16: #{conv_block_forward.1} parent=11 // pred_fallthru
        _
      // Predicated region
      $region17: #{conv_block_forward.1} parent=11 // pred_check
        %p200 = pneg %p126
      $region18: #{conv_block_forward.1} parent=11 // pred_check_branch
        %202 = sbr.rel (%p200) target = $region20
      $region19: #{conv_block_forward.1} parent=11 // pred_region
        _
      $region20: #{conv_block_forward.1} parent=11 // pred_fallthru
        _
    $region12: #{conv_block_forward.1} parent=5 // pred_fallthru
      _
    %p203 = scmp.lt.s32.totalorder %s12, 2
    // Predicated region
    $region21: #{conv_block_forward.1} parent=5 // pred_check
      %p204 = pneg %p203
    $region22: #{conv_block_forward.1} parent=5 // pred_check_branch
      %206 = sbr.rel (%p204) target = $region24
    $region23: #{conv_block_forward.1} parent=5 // pred_region
      // Predicated region
      $region25: #{conv_block_forward.1} parent=23 // pred_check
        %p207 = pneg %p46
      $region26: #{conv_block_forward.1} parent=23 // pred_check_branch
        %209 = sbr.rel (%p207) target = $region28
      $region27: #{conv_block_forward.1} parent=23 // pred_region
        %s210 = smul.u32 8, %s20
        %s211 = ssub.s32 9, %s210
        %p212 = scmp.lt.s32.totalorder %s211, 8
        %s213 = scalar_select %p212, %s211, 8
        %s214 = smul.u32 64, %s213
        %s215 = smul.u32 %s214, 2
        %p216 = scmp.lt.s32.totalorder %s19, 1
        %s217 = scalar_select %p216, %s19, 1
        %p218 = scmp.lt.s32.totalorder %s210, 8
        %s219 = scalar_select %p218, %s210, 8
        %s220 = smul.addr %s219, 2
        %s221 = smul.addr %s217, 18
        %s222 = sadd.s32 %s220, %s221
        %s223 = smul.addr %s222, 4
        %s224 = scalar_lea.vmem %s0, %s223
        %s225 = smul.u32 8, %s20
        %s226 = ssub.s32 9, %s225
        %p227 = scmp.lt.s32.totalorder %s226, 8
        %s228 = scalar_select %p227, %s226, 8
        %s229 = smul.u32 64, %s228
        %s230 = smul.u32 %s229, 2
      $region28: #{conv_block_forward.1} parent=23 // pred_fallthru
        _
      // Predicated region
      $region29: #{conv_block_forward.1} parent=23 // pred_check
        %p231 = pneg %p78
      $region30: #{conv_block_forward.1} parent=23 // pred_check_branch
        %233 = sbr.rel (%p231) target = $region32
      $region31: #{conv_block_forward.1} parent=23 // pred_region
        %s234 = sadd.s32 %s20, 1
        %s235 = smul.u32 %s234, 8
        %p236 = scmp.lt.s32.totalorder %s19, 1
        %s237 = scalar_select %p236, %s19, 1
        %p238 = scmp.lt.s32.totalorder %s235, 8
        %s239 = scalar_select %p238, %s235, 8
        %s240 = smul.addr %s239, 2
        %s241 = smul.addr %s237, 18
        %s242 = sadd.s32 %s240, %s241
        %s243 = smul.addr %s242, 4
        %s244 = scalar_lea.vmem %s1, %s243
        %s245 = sadd.s32 %s20, 1
        %s246 = smul.u32 %s245, 8
      $region32: #{conv_block_forward.1} parent=23 // pred_fallthru
        _
    $region24: #{conv_block_forward.1} parent=5 // pred_fallthru
      _
    %p247 = scmp.le.s32.totalorder 1, %s12
    %p248 = scmp.lt.s32.totalorder %s12, 3
    %p249 = pnand %p247, %p248
    %p250 = pneg %p249
    // Predicated region
    $region33: #{conv_block_forward.1} parent=5 // pred_check
      _
    $region34: #{conv_block_forward.1} parent=5 // pred_check_branch
      %252 = sbr.rel (%p249) target = $region36
    $region35: #{conv_block_forward.1} parent=5 // pred_region
      %s253 = ssub.s32 %s12, 1
      %s254 = smul.u32 8, %s22
      %s255 = ssub.s32 9, %s254
      %p256 = scmp.lt.s32.totalorder %s255, 8
      %s257 = scalar_select %p256, %s255, 8
      %s258 = smul.u32 64, %s257
      %s259 = smul.u32 %s258, 2
      %p260 = scmp.lt.s32.totalorder %s21, 1
      %s261 = scalar_select %p260, %s21, 1
      %p262 = scmp.lt.s32.totalorder %s254, 8
      %s263 = scalar_select %p262, %s254, 8
      %s264 = smul.addr %s263, 2
      %s265 = smul.addr %s261, 18
      %s266 = sadd.s32 %s264, %s265
      %s267 = smul.addr %s266, 4
      %s268 = scalar_lea.vmem %s0, %s267
      %p269 = pneg %p52
      %p270 = pneg %p49
      %s271 = sadd.s32 %s22, 1
      %s272 = smul.u32 %s271, 8
      %p273 = scmp.lt.s32.totalorder %s21, 1
      %s274 = scalar_select %p273, %s21, 1
      %p275 = scmp.lt.s32.totalorder %s272, 8
      %s276 = scalar_select %p275, %s272, 8
      %s277 = smul.addr %s276, 2
      %s278 = smul.addr %s274, 18
      %s279 = sadd.s32 %s277, %s278
      %s280 = smul.addr %s279, 4
      %s281 = scalar_lea.vmem %s1, %s280
      %p282 = pneg %p84
      %p283 = pneg %p81
      %p284 = pneg %p105
      %p285 = pneg %p102
      %p286 = pneg %p126
      %p287 = pneg %p123
      %p288 = pneg %p154
      %p289 = pneg %p151
      %s290 = smul.u32 8, %s22
      %p291 = scmp.lt.s32.totalorder %s21, 1
      %s292 = scalar_select %p291, %s21, 1
      %p293 = scmp.lt.s32.totalorder %s290, 7
      %s294 = scalar_select %p293, %s290, 7
      %s295 = smul.addr %s292, 8
      %s296 = sadd.s32 %s294, %s295
      %s297 = smul.addr %s296, 4
      %s298 = scalar_lea.vmem %s4, %s297
      %p299 = pneg %p182
      %p300 = pneg %p179
      %p301 = scmp.lt.s32.totalorder %s21, 1
      %s302 = scalar_select %p301, %s21, 1
      %p303 = scmp.lt.s32.totalorder %s22, 0
      %s304 = scalar_select %p303, %s22, 0
      %s305 = sadd.s32 %s304, %s302
      %s306 = smul.addr %s305, 2
      %s307 = scalar_lea.vmem %s5, %s306
      %s308 = smul.u32 8, %s22
      %s309 = ssub.s32 9, %s308
      %p310 = scmp.lt.s32.totalorder %s309, 8
      %s311 = scalar_select %p310, %s309, 8
      %s312 = smul.u32 64, %s311
      %s313 = smul.u32 %s312, 2
      %p314 = scmp.lt.s32.totalorder %s21, 1
      %s315 = scalar_select %p314, %s21, 1
      %p316 = scmp.lt.s32.totalorder %s308, 8
      %s317 = scalar_select %p316, %s308, 8
      %s318 = smul.addr %s317, 2
      %s319 = smul.addr %s315, 18
      %s320 = sadd.s32 %s318, %s319
      %s321 = smul.addr %s320, 4
      %s322 = scalar_lea.vmem %s0, %s321
      %s323 = smul.u32 8, %s22
      %s324 = ssub.s32 9, %s323
      %p325 = scmp.lt.s32.totalorder %s324, 8
      %s326 = scalar_select %p325, %s324, 8
      %s327 = smul.u32 64, %s326
      %s328 = smul.u32 %s327, 2
      %s329 = sadd.s32 %s22, 1
      %s330 = smul.u32 %s329, 8
      %p331 = scmp.lt.s32.totalorder %s21, 1
      %s332 = scalar_select %p331, %s21, 1
      %p333 = scmp.lt.s32.totalorder %s330, 8
      %s334 = scalar_select %p333, %s330, 8
      %s335 = smul.addr %s334, 2
      %s336 = smul.addr %s332, 18
      %s337 = sadd.s32 %s335, %s336
      %s338 = smul.addr %s337, 4
      %s339 = scalar_lea.vmem %s1, %s338
      %s340 = sadd.s32 %s22, 1
      %s341 = smul.u32 %s340, 8
      %s342 = smul.u32 8, %s22
      %p343 = scmp.lt.s32.totalorder %s21, 1
      %s344 = scalar_select %p343, %s21, 1
      %p345 = scmp.lt.s32.totalorder %s342, 7
      %s346 = scalar_select %p345, %s342, 7
      %s347 = smul.addr %s344, 8
      %s348 = sadd.s32 %s346, %s347
      %s349 = smul.addr %s348, 4
      %s350 = scalar_lea.vmem %s4, %s349
      %s351 = smul.u32 8, %s22
      %p352 = scmp.lt.s32.totalorder %s21, 1
      %s353 = scalar_select %p352, %s21, 1
      %p354 = scmp.lt.s32.totalorder %s22, 0
      %s355 = scalar_select %p354, %s22, 0
      %s356 = sadd.s32 %s355, %s353
      %s357 = smul.addr %s356, 2
      %s358 = scalar_lea.vmem %s5, %s357
      %v360 = vld [vmem:[%s322] sm:$0xf]
      %v361 = vld [vmem:[%s322 + $0x4] sm:$0x1]
      %v362 = vld [vmem:[%s322 + $0x8] sm:$0xf]
      %v363 = vld [vmem:[%s322 + $0xc] sm:$0x1]
      %v364 = vld [vmem:[%s322 + $0x10] sm:$0xf]
      %v365 = vld [vmem:[%s322 + $0x14] sm:$0x1]
      %v366 = vld [vmem:[%s322 + $0x18] sm:$0xf]
      %v367 = vld [vmem:[%s322 + $0x1c] sm:$0x1]
      %v368 = vld [vmem:[%s322 + $0x20] sm:$0xf]
      %v369 = vld [vmem:[%s322 + $0x24] sm:$0x1]
      %v370 = vld [vmem:[%s322 + $0x28] sm:$0xf]
      %v371 = vld [vmem:[%s322 + $0x2c] sm:$0x1]
      %v372 = vld [vmem:[%s322 + $0x30] sm:$0xf]
      %v373 = vld [vmem:[%s322 + $0x34] sm:$0x1]
      %v374 = vld [vmem:[%s322 + $0x38] sm:$0xf]
      %v375 = vld [vmem:[%s322 + $0x3c] sm:$0x1]
      %v376 = vld [vmem:[%s339] sm:$0xf]
      %v377 = vld [vmem:[%s339 + $0x4] sm:$0x1]
      %v378 = vld [vmem:[%s2] sm:$0xf]
      %v379 = vld [vmem:[%s2 + $0x4] sm:$0xf]
      %vm380 = vsmask.f32 3328
      %vm381 = vsmask.f32 7440
      %vm382 = vmor %vm380, %vm381
      %v384 = vshrl.u32 %v360, 16
      %v386 = vrot.slane %v384, 4
      %v387 = vshll.u32 %v360, 16
      %v389 = vrot.slane %v387, 5
      %v390 = vor.u32 %v386, %v389
      %v391 = vrot.slane %v390, 4
      %v393 = vshll.u32 %v361, 16
      %v395 = vrot.slane %v393, 5
      %v396 = vsel %vm382, %v391, %v395
      %v398 = vshrl.u32 %v362, 16
      %v400 = vrot.slane %v398, 4
      %v401 = vshll.u32 %v362, 16
      %v403 = vrot.slane %v401, 5
      %v404 = vor.u32 %v400, %v403
      %v405 = vrot.slane %v404, 4
      %v407 = vshll.u32 %v363, 16
      %v409 = vrot.slane %v407, 5
      %v410 = vsel %vm382, %v405, %v409
      %v412 = vshrl.u32 %v364, 16
      %v414 = vrot.slane %v412, 4
      %v415 = vshll.u32 %v364, 16
      %v417 = vrot.slane %v415, 5
      %v418 = vor.u32 %v414, %v417
      %v419 = vrot.slane %v418, 4
      %v421 = vshll.u32 %v365, 16
      %v423 = vrot.slane %v421, 5
      %v424 = vsel %vm382, %v419, %v423
      %v426 = vshrl.u32 %v366, 16
      %v428 = vrot.slane %v426, 4
      %v429 = vshll.u32 %v366, 16
      %v431 = vrot.slane %v429, 5
      %v432 = vor.u32 %v428, %v431
      %v433 = vrot.slane %v432, 4
      %v435 = vshll.u32 %v367, 16
      %v437 = vrot.slane %v435, 5
      %v438 = vsel %vm382, %v433, %v437
      %v440 = vshrl.u32 %v368, 16
      %v442 = vrot.slane %v440, 4
      %v443 = vshll.u32 %v368, 16
      %v445 = vrot.slane %v443, 5
      %v446 = vor.u32 %v442, %v445
      %v447 = vrot.slane %v446, 4
      %v449 = vshll.u32 %v369, 16
      %v451 = vrot.slane %v449, 5
      %v452 = vsel %vm382, %v447, %v451
      %v454 = vshrl.u32 %v370, 16
      %v456 = vrot.slane %v454, 4
      %v457 = vshll.u32 %v370, 16
      %v459 = vrot.slane %v457, 5
      %v460 = vor.u32 %v456, %v459
      %v461 = vrot.slane %v460, 4
      %v463 = vshll.u32 %v371, 16
      %v465 = vrot.slane %v463, 5
      %v466 = vsel %vm382, %v461, %v465
      %v468 = vshrl.u32 %v372, 16
      %v470 = vrot.slane %v468, 4
      %v471 = vshll.u32 %v372, 16
      %v473 = vrot.slane %v471, 5
      %v474 = vor.u32 %v470, %v473
      %v475 = vrot.slane %v474, 4
      %v477 = vshll.u32 %v373, 16
      %v479 = vrot.slane %v477, 5
      %v480 = vsel %vm382, %v475, %v479
      %v482 = vshrl.u32 %v374, 16
      %v484 = vrot.slane %v482, 4
      %v485 = vshll.u32 %v374, 16
      %v487 = vrot.slane %v485, 5
      %v488 = vor.u32 %v484, %v487
      %v489 = vrot.slane %v488, 4
      %v491 = vshll.u32 %v375, 16
      %v493 = vrot.slane %v491, 5
      %v494 = vsel %vm382, %v489, %v493
      %s495 = scalar_lea.vmem %s2, 8
      %v496 = vld [vmem:[%s495] sm:$0xf]
      %v497 = vld [vmem:[%s495 + $0x4] sm:$0xf]
      %v498 = vunpack.c.l.b16 %v396
      %v499 = vunpack.c.l.b16 %v410
      %v500 = vunpack.c.l.b16 %v424
      %v501 = vunpack.c.l.b16 %v438
      %v502 = vunpack.c.l.b16 %v452
      %v503 = vunpack.c.l.b16 %v466
      %v504 = vunpack.c.l.b16 %v480
      %v505 = vunpack.c.l.b16 %v494
      %v506 = vpack.c.b16 %v499, %v498
      %v507 = vpack.c.b16 %v501, %v500
      %v508 = vpack.c.b16 %v503, %v502
      %v509 = vpack.c.b16 %v505, %v504
      %v512 = vunpack.c.l.b16 %v496
      %v513 = vunpack.c.l.b16 %v497
      %v514 = vpack.c.b16 %v513, %v512
      %vm516 = vcmask 130048
      %v518 = vsel %vm516, %v506, 0
      %v521 = vsel %vm516, %v507, 0
      %v524 = vsel %vm516, %v508, 0
      %v527 = vsel %vm516, %v509, 0
      %529 = vmatprep.subr.bf16.mxu0 0
      %530 = vmatpush1.bf16.msra.mxu0 %v514
      %531 = vmatprep.subr.bf16.mxu0 0
      %532 = vmatpush1.bf16.msra.mxu0 0
      %533 = vmatprep.subr.bf16.mxu0 0
      %534 = vmatpush1.bf16.msra.mxu0 0
      %535 = vmatprep.subr.bf16.mxu0 0
      %536 = vmatpush1.bf16.msra.mxu0 0
      %537 = vmatprep.subr.bf16.mxu0 0
      %538 = vmatpush1.bf16.msra.mxu0 0
      %539 = vmatprep.subr.bf16.mxu0 0
      %540 = vmatpush1.bf16.msra.mxu0 0
      %541 = vmatprep.subr.bf16.mxu0 0
      %542 = vmatpush1.bf16.msra.mxu0 0
      %543 = vmatprep.subr.bf16.mxu0 0
      %544 = vmatpush1.bf16.msra.mxu0 0
      %545 = vmatprep.subr.bf16.mxu0 0
      %546 = vmatpush1.bf16.msra.mxu0 0
      %547 = vmatprep.subr.bf16.mxu0 0
      %548 = vmatpush1.bf16.msra.mxu0 0
      %549 = vmatprep.subr.bf16.mxu0 0
      %550 = vmatpush1.bf16.msra.mxu0 0
      %551 = vmatprep.subr.bf16.mxu0 0
      %552 = vmatpush1.bf16.msra.mxu0 0
      %553 = vmatprep.subr.bf16.mxu0 0
      %554 = vmatpush1.bf16.msra.mxu0 0
      %555 = vmatprep.subr.bf16.mxu0 0
      %556 = vmatpush1.bf16.msra.mxu0 0
      %557 = vmatprep.subr.bf16.mxu0 0
      %558 = vmatpush1.bf16.msra.mxu0 0
      %559 = vmatprep.subr.bf16.mxu0 0
      %560 = vmatpush1.bf16.msra.mxu0 0
      %561 = vmatprep.mubr.bf16.mxu0 0
      %562 = vmatmul.mubr.bf16.gmra.mrb[0].mxu0 %v518
      %v563 = vpop.f32.mrb[0].mxu0
      %v564 = vadd.f32 0.0, %v563
      %v565 = vpop.f32.mrb[0].mxu0
      %v566 = vpop.f32.mrb[0].mxu0
      %v567 = vadd.f32 0.0, %v566
      %v568 = vpop.f32.mrb[0].mxu0
      %569 = vmatprep.mubr.bf16.mxu0 0
      %570 = vmatmul.mubr.bf16.gmra.mrb[0].mxu0 %v521
      %v571 = vpop.f32.mrb[0].mxu0
      %v572 = vadd.f32 0.0, %v571
      %v573 = vpop.f32.mrb[0].mxu0
      %v574 = vpop.f32.mrb[0].mxu0
      %v575 = vadd.f32 0.0, %v574
      %v576 = vpop.f32.mrb[0].mxu0
      %577 = vmatprep.mubr.bf16.mxu0 0
      %578 = vmatmul.mubr.bf16.gmra.mrb[0].mxu0 %v524
      %v579 = vpop.f32.mrb[0].mxu0
      %v580 = vadd.f32 0.0, %v579
      %v581 = vpop.f32.mrb[0].mxu0
      %v582 = vpop.f32.mrb[0].mxu0
      %v583 = vadd.f32 0.0, %v582
      %v584 = vpop.f32.mrb[0].mxu0
      %585 = vmatprep.mubr.bf16.mxu0 0
      %586 = vmatmul.mubr.bf16.gmra.mrb[0].mxu0 %v527
      %v587 = vpop.f32.mrb[0].mxu0
      %v588 = vadd.f32 0.0, %v587
      %v589 = vpop.f32.mrb[0].mxu0
      %v590 = vpop.f32.mrb[0].mxu0
      %v591 = vadd.f32 0.0, %v590
      %v592 = vpop.f32.mrb[0].mxu0
      %593 = vdwg.mxu0
      %v602 = vunpack.c.l.b16 %v360
      %v603 = vunpack.c.l.b16 %v362
      %v604 = vunpack.c.l.b16 %v364
      %v605 = vunpack.c.l.b16 %v366
      %v606 = vunpack.c.l.b16 %v368
      %v607 = vunpack.c.l.b16 %v370
      %v608 = vunpack.c.l.b16 %v372
      %v609 = vunpack.c.l.b16 %v374
      %v610 = vpack.c.b16 %v603, %v602
      %v611 = vpack.c.b16 %v605, %v604
      %v612 = vpack.c.b16 %v607, %v606
      %v613 = vpack.c.b16 %v609, %v608
      %v616 = vunpack.c.l.b16 %v378
      %v617 = vunpack.c.l.b16 %v379
      %v618 = vpack.c.b16 %v617, %v616
      %v621 = vsel %vm516, %v610, 0
      %v624 = vsel %vm516, %v611, 0
      %v627 = vsel %vm516, %v612, 0
      %v630 = vsel %vm516, %v613, 0
      %632 = vmatprep.subr.bf16.mxu0 0
      %633 = vmatpush1.bf16.msra.mxu0 %v618
      %634 = vmatprep.subr.bf16.mxu0 0
      %635 = vmatpush1.bf16.msra.mxu0 0
      %636 = vmatprep.subr.bf16.mxu0 0
      %637 = vmatpush1.bf16.msra.mxu0 0
      %638 = vmatprep.subr.bf16.mxu0 0
      %639 = vmatpush1.bf16.msra.mxu0 0
      %640 = vmatprep.subr.bf16.mxu0 0
      %641 = vmatpush1.bf16.msra.mxu0 0
      %642 = vmatprep.subr.bf16.mxu0 0
      %643 = vmatpush1.bf16.msra.mxu0 0
      %644 = vmatprep.subr.bf16.mxu0 0
      %645 = vmatpush1.bf16.msra.mxu0 0
      %646 = vmatprep.subr.bf16.mxu0 0
      %647 = vmatpush1.bf16.msra.mxu0 0
      %648 = vmatprep.subr.bf16.mxu0 0
      %649 = vmatpush1.bf16.msra.mxu0 0
      %650 = vmatprep.subr.bf16.mxu0 0
      %651 = vmatpush1.bf16.msra.mxu0 0
      %652 = vmatprep.subr.bf16.mxu0 0
      %653 = vmatpush1.bf16.msra.mxu0 0
      %654 = vmatprep.subr.bf16.mxu0 0
      %655 = vmatpush1.bf16.msra.mxu0 0
      %656 = vmatprep.subr.bf16.mxu0 0
      %657 = vmatpush1.bf16.msra.mxu0 0
      %658 = vmatprep.subr.bf16.mxu0 0
      %659 = vmatpush1.bf16.msra.mxu0 0
      %660 = vmatprep.subr.bf16.mxu0 0
      %661 = vmatpush1.bf16.msra.mxu0 0
      %662 = vmatprep.subr.bf16.mxu0 0
      %663 = vmatpush1.bf16.msra.mxu0 0
      %664 = vmatprep.mubr.bf16.mxu0 0
      %665 = vmatmul.mubr.bf16.gmra.mrb[0].mxu0 %v621
      %v666 = vpop.f32.mrb[0].mxu0
      %v667 = vadd.f32 %v564, %v666
      %v668 = vpop.f32.mrb[0].mxu0
      %v669 = vpop.f32.mrb[0].mxu0
      %v670 = vadd.f32 %v567, %v669
      %v671 = vpop.f32.mrb[0].mxu0
      %672 = vmatprep.mubr.bf16.mxu0 0
      %673 = vmatmul.mubr.bf16.gmra.mrb[0].mxu0 %v624
      %v674 = vpop.f32.mrb[0].mxu0
      %v675 = vadd.f32 %v572, %v674
      %v676 = vpop.f32.mrb[0].mxu0
      %v677 = vpop.f32.mrb[0].mxu0
      %v678 = vadd.f32 %v575, %v677
      %v679 = vpop.f32.mrb[0].mxu0
      %680 = vmatprep.mubr.bf16.mxu0 0
      %681 = vmatmul.mubr.bf16.gmra.mrb[0].mxu0 %v627
      %v682 = vpop.f32.mrb[0].mxu0
      %v683 = vadd.f32 %v580, %v682
      %v684 = vpop.f32.mrb[0].mxu0
      %v685 = vpop.f32.mrb[0].mxu0
      %v686 = vadd.f32 %v583, %v685
      %v687 = vpop.f32.mrb[0].mxu0
      %688 = vmatprep.mubr.bf16.mxu0 0
      %689 = vmatmul.mubr.bf16.gmra.mrb[0].mxu0 %v630
      %v690 = vpop.f32.mrb[0].mxu0
      %v691 = vadd.f32 %v588, %v690
      %v692 = vpop.f32.mrb[0].mxu0
      %v693 = vpop.f32.mrb[0].mxu0
      %v694 = vadd.f32 %v591, %v693
      %v695 = vpop.f32.mrb[0].mxu0
      %696 = vdwg.mxu0
      %s697 = scalar_lea.vmem %s2, 16
      %v698 = vld [vmem:[%s697] sm:$0xf]
      %v699 = vld [vmem:[%s697 + $0x4] sm:$0xf]
      %v701 = vunpack.c.l.b16 %v376
      %v702 = vpack.c.b16 %v604, %v603
      %v703 = vpack.c.b16 %v606, %v605
      %v704 = vpack.c.b16 %v608, %v607
      %v705 = vpack.c.b16 %v701, %v609
      %v708 = vunpack.c.l.b16 %v698
      %v709 = vunpack.c.l.b16 %v699
      %v710 = vpack.c.b16 %v709, %v708
      %v713 = vsel %vm516, %v702, 0
      %v716 = vsel %vm516, %v703, 0
      %v719 = vsel %vm516, %v704, 0
      %v722 = vsel %vm516, %v705, 0
      %724 = vmatprep.subr.bf16.mxu0 0
      %725 = vmatpush1.bf16.msra.mxu0 %v710
      %726 = vmatprep.subr.bf16.mxu0 0
      %727 = vmatpush1.bf16.msra.mxu0 0
      %728 = vmatprep.subr.bf16.mxu0 0
      %729 = vmatpush1.bf16.msra.mxu0 0
      %730 = vmatprep.subr.bf16.mxu0 0
      %731 = vmatpush1.bf16.msra.mxu0 0
      %732 = vmatprep.subr.bf16.mxu0 0
      %733 = vmatpush1.bf16.msra.mxu0 0
      %734 = vmatprep.subr.bf16.mxu0 0
      %735 = vmatpush1.bf16.msra.mxu0 0
      %736 = vmatprep.subr.bf16.mxu0 0
      %737 = vmatpush1.bf16.msra.mxu0 0
      %738 = vmatprep.subr.bf16.mxu0 0
      %739 = vmatpush1.bf16.msra.mxu0 0
      %740 = vmatprep.subr.bf16.mxu0 0
      %741 = vmatpush1.bf16.msra.mxu0 0
      %742 = vmatprep.subr.bf16.mxu0 0
      %743 = vmatpush1.bf16.msra.mxu0 0
      %744 = vmatprep.subr.bf16.mxu0 0
      %745 = vmatpush1.bf16.msra.mxu0 0
      %746 = vmatprep.subr.bf16.mxu0 0
      %747 = vmatpush1.bf16.msra.mxu0 0
      %748 = vmatprep.subr.bf16.mxu0 0
      %749 = vmatpush1.bf16.msra.mxu0 0
      %750 = vmatprep.subr.bf16.mxu0 0
      %751 = vmatpush1.bf16.msra.mxu0 0
      %752 = vmatprep.subr.bf16.mxu0 0
      %753 = vmatpush1.bf16.msra.mxu0 0
      %754 = vmatprep.subr.bf16.mxu0 0
      %755 = vmatpush1.bf16.msra.mxu0 0
      %756 = vmatprep.mubr.bf16.mxu0 0
      %757 = vmatmul.mubr.bf16.gmra.mrb[0].mxu0 %v713
      %v758 = vpop.f32.mrb[0].mxu0
      %v759 = vadd.f32 0.0, %v758
      %v760 = vpop.f32.mrb[0].mxu0
      %v761 = vpop.f32.mrb[0].mxu0
      %v762 = vadd.f32 0.0, %v761
      %v763 = vpop.f32.mrb[0].mxu0
      %764 = vmatprep.mubr.bf16.mxu0 0
      %765 = vmatmul.mubr.bf16.gmra.mrb[0].mxu0 %v716
      %v766 = vpop.f32.mrb[0].mxu0
      %v767 = vadd.f32 0.0, %v766
      %v768 = vpop.f32.mrb[0].mxu0
      %v769 = vpop.f32.mrb[0].mxu0
      %v770 = vadd.f32 0.0, %v769
      %v771 = vpop.f32.mrb[0].mxu0
      %772 = vmatprep.mubr.bf16.mxu0 0
      %773 = vmatmul.mubr.bf16.gmra.mrb[0].mxu0 %v719
      %v774 = vpop.f32.mrb[0].mxu0
      %v775 = vadd.f32 0.0, %v774
      %v776 = vpop.f32.mrb[0].mxu0
      %v777 = vpop.f32.mrb[0].mxu0
      %v778 = vadd.f32 0.0, %v777
      %v779 = vpop.f32.mrb[0].mxu0
      %780 = vmatprep.mubr.bf16.mxu0 0
      %781 = vmatmul.mubr.bf16.gmra.mrb[0].mxu0 %v722
      %v782 = vpop.f32.mrb[0].mxu0
      %v783 = vadd.f32 0.0, %v782
      %v784 = vpop.f32.mrb[0].mxu0
      %v785 = vpop.f32.mrb[0].mxu0
      %v786 = vadd.f32 0.0, %v785
      %v787 = vpop.f32.mrb[0].mxu0
      %788 = vdwg.mxu0
      %v789 = vadd.f32 %v667, %v759
      %v790 = vadd.f32 %v670, %v762
      %v791 = vadd.f32 %v675, %v767
      %v792 = vadd.f32 %v678, %v770
      %v793 = vadd.f32 %v683, %v775
      %v794 = vadd.f32 %v686, %v778
      %v795 = vadd.f32 %v691, %v783
      %v796 = vadd.f32 %v694, %v786
      %v798 = vshrl.u32 %v376, 16
      %v800 = vrot.slane %v798, 4
      %v801 = vshll.u32 %v376, 16
      %v803 = vrot.slane %v801, 5
      %v804 = vor.u32 %v800, %v803
      %v805 = vrot.slane %v804, 4
      %v807 = vshll.u32 %v377, 16
      %v809 = vrot.slane %v807, 5
      %v810 = vsel %vm382, %v805, %v809
      %s811 = scalar_lea.vmem %s2, 24
      %v812 = vld [vmem:[%s811] sm:$0xf]
      %v813 = vld [vmem:[%s811 + $0x4] sm:$0xf]
      %v814 = vunpack.c.l.b16 %v810
      %v815 = vpack.c.b16 %v500, %v499
      %v816 = vpack.c.b16 %v502, %v501
      %v817 = vpack.c.b16 %v504, %v503
      %v818 = vpack.c.b16 %v814, %v505
      %v821 = vunpack.c.l.b16 %v812
      %v822 = vunpack.c.l.b16 %v813
      %v823 = vpack.c.b16 %v822, %v821
      %v826 = vsel %vm516, %v815, 0
      %v829 = vsel %vm516, %v816, 0
      %v832 = vsel %vm516, %v817, 0
      %v835 = vsel %vm516, %v818, 0
      %837 = vmatprep.subr.bf16.mxu0 0
      %838 = vmatpush1.bf16.msra.mxu0 %v823
      %839 = vmatprep.subr.bf16.mxu0 0
      %840 = vmatpush1.bf16.msra.mxu0 0
      %841 = vmatprep.subr.bf16.mxu0 0
      %842 = vmatpush1.bf16.msra.mxu0 0
      %843 = vmatprep.subr.bf16.mxu0 0
      %844 = vmatpush1.bf16.msra.mxu0 0
      %845 = vmatprep.subr.bf16.mxu0 0
      %846 = vmatpush1.bf16.msra.mxu0 0
      %847 = vmatprep.subr.bf16.mxu0 0
      %848 = vmatpush1.bf16.msra.mxu0 0
      %849 = vmatprep.subr.bf16.mxu0 0
      %850 = vmatpush1.bf16.msra.mxu0 0
      %851 = vmatprep.subr.bf16.mxu0 0
      %852 = vmatpush1.bf16.msra.mxu0 0
      %853 = vmatprep.subr.bf16.mxu0 0
      %854 = vmatpush1.bf16.msra.mxu0 0
      %855 = vmatprep.subr.bf16.mxu0 0
      %856 = vmatpush1.bf16.msra.mxu0 0
      %857 = vmatprep.subr.bf16.mxu0 0
      %858 = vmatpush1.bf16.msra.mxu0 0
      %859 = vmatprep.subr.bf16.mxu0 0
      %860 = vmatpush1.bf16.msra.mxu0 0
      %861 = vmatprep.subr.bf16.mxu0 0
      %862 = vmatpush1.bf16.msra.mxu0 0
      %863 = vmatprep.subr.bf16.mxu0 0
      %864 = vmatpush1.bf16.msra.mxu0 0
      %865 = vmatprep.subr.bf16.mxu0 0
      %866 = vmatpush1.bf16.msra.mxu0 0
      %867 = vmatprep.subr.bf16.mxu0 0
      %868 = vmatpush1.bf16.msra.mxu0 0
      %869 = vmatprep.mubr.bf16.mxu0 0
      %870 = vmatmul.mubr.bf16.gmra.mrb[0].mxu0 %v826
      %v871 = vpop.f32.mrb[0].mxu0
      %v872 = vadd.f32 0.0, %v871
      %v873 = vpop.f32.mrb[0].mxu0
      %v874 = vpop.f32.mrb[0].mxu0
      %v875 = vadd.f32 0.0, %v874
      %v876 = vpop.f32.mrb[0].mxu0
      %877 = vmatprep.mubr.bf16.mxu0 0
      %878 = vmatmul.mubr.bf16.gmra.mrb[0].mxu0 %v829
      %v879 = vpop.f32.mrb[0].mxu0
      %v880 = vadd.f32 0.0, %v879
      %v881 = vpop.f32.mrb[0].mxu0
      %v882 = vpop.f32.mrb[0].mxu0
      %v883 = vadd.f32 0.0, %v882
      %v884 = vpop.f32.mrb[0].mxu0
      %885 = vmatprep.mubr.bf16.mxu0 0
      %886 = vmatmul.mubr.bf16.gmra.mrb[0].mxu0 %v832
      %v887 = vpop.f32.mrb[0].mxu0
      %v888 = vadd.f32 0.0, %v887
      %v889 = vpop.f32.mrb[0].mxu0
      %v890 = vpop.f32.mrb[0].mxu0
      %v891 = vadd.f32 0.0, %v890
      %v892 = vpop.f32.mrb[0].mxu0
      %893 = vmatprep.mubr.bf16.mxu0 0
      %894 = vmatmul.mubr.bf16.gmra.mrb[0].mxu0 %v835
      %v895 = vpop.f32.mrb[0].mxu0
      %v896 = vadd.f32 0.0, %v895
      %v897 = vpop.f32.mrb[0].mxu0
      %v898 = vpop.f32.mrb[0].mxu0
      %v899 = vadd.f32 0.0, %v898
      %v900 = vpop.f32.mrb[0].mxu0
      %901 = vdwg.mxu0
      %v902 = vadd.f32 %v789, %v872
      %v903 = vadd.f32 %v790, %v875
      %v904 = vadd.f32 %v791, %v880
      %v905 = vadd.f32 %v792, %v883
      %v906 = vadd.f32 %v793, %v888
      %v907 = vadd.f32 %v794, %v891
      %v908 = vadd.f32 %v795, %v896
      %v909 = vadd.f32 %v796, %v899
      %v910 = vld [vmem:[%s3] sm:$0x1]
      %v912 = vlaneseq
      %v913 = vshrl.u32 %v912, 7
      %v914 = vsub.s32 0, %v913
      %v915 = vrot.slane %v910, %v914
      %v917 = vadd.f32 %v902, %v915
      %v918 = vadd.f32 %v903, %v915
      %v919 = vadd.f32 %v904, %v915
      %v920 = vadd.f32 %v905, %v915
      %v921 = vadd.f32 %v906, %v915
      %v922 = vadd.f32 %v907, %v915
      %v923 = vadd.f32 %v908, %v915
      %v924 = vadd.f32 %v909, %v915
      %v925 = vmax.f32 %v917, 0.0
      %v926 = vmax.f32 %v918, 0.0
      %v927 = vmax.f32 %v919, 0.0
      %v928 = vmax.f32 %v920, 0.0
      %v929 = vmax.f32 %v921, 0.0
      %v930 = vmax.f32 %v922, 0.0
      %v931 = vmax.f32 %v923, 0.0
      %v932 = vmax.f32 %v924, 0.0
      %v933 = vadd.f32 %v925, %v926
      %v934 = vadd.f32 %v933, %v927
      %v935 = vadd.f32 %v934, %v928
      %v936 = vadd.f32 %v935, %v929
      %v937 = vadd.f32 %v936, %v930
      %v938 = vadd.f32 %v937, %v931
      %v939 = vadd.f32 %v938, %v932
      %v940 = vrot.slane %v939, 4
      %v941 = vadd.f32 %v939, %v940
      %v942 = vrot.slane %v941, 2
      %v943 = vadd.f32 %v941, %v942
      %v944 = vrot.slane %v943, 1
      %v945 = vadd.f32 %v943, %v944
      %v946 = vmul.f32 %v945, 0.015625
      %v947 = vsub.f32 %v925, %v946
      %v948 = vsub.f32 %v926, %v946
      %v949 = vsub.f32 %v927, %v946
      %v950 = vsub.f32 %v928, %v946
      %v951 = vsub.f32 %v929, %v946
      %v952 = vsub.f32 %v930, %v946
      %v953 = vsub.f32 %v931, %v946
      %v954 = vsub.f32 %v932, %v946
      %v955 = vmul.f32 %v947, %v947
      %v956 = vmul.f32 %v948, %v948
      %v957 = vmul.f32 %v949, %v949
      %v958 = vmul.f32 %v950, %v950
      %v959 = vmul.f32 %v951, %v951
      %v960 = vmul.f32 %v952, %v952
      %v961 = vmul.f32 %v953, %v953
      %v962 = vmul.f32 %v954, %v954
      %v963 = vadd.f32 %v955, %v956
      %v964 = vadd.f32 %v963, %v957
      %v965 = vadd.f32 %v964, %v958
      %v966 = vadd.f32 %v965, %v959
      %v967 = vadd.f32 %v966, %v960
      %v968 = vadd.f32 %v967, %v961
      %v969 = vadd.f32 %v968, %v962
      %v970 = vrot.slane %v969, 4
      %v971 = vadd.f32 %v969, %v970
      %v972 = vrot.slane %v971, 2
      %v973 = vadd.f32 %v971, %v972
      %v974 = vrot.slane %v973, 1
      %v975 = vadd.f32 %v973, %v974
      %vm976 = vcmask 1040384
      %v977 = vsel %vm976, %v945, %v975
      %978 = vst [vmem:[%s358] sm:$0x3] %v977
      %v979 = vpack.c.bf16 %v925, %v925
      %v980 = vpack.c.bf16 %v926, %v926
      %v981 = vpack.c.bf16 %v927, %v927
      %v982 = vpack.c.bf16 %v928, %v928
      %v983 = vpack.c.bf16 %v929, %v929
      %v984 = vpack.c.bf16 %v930, %v930
      %v985 = vpack.c.bf16 %v931, %v931
      %v986 = vpack.c.bf16 %v932, %v932
      %987 = vst [vmem:[%s350] sm:$0xf] %v979
      %988 = vst [vmem:[%s350 + $0x4] sm:$0xf] %v980
      %989 = vst [vmem:[%s350 + $0x8] sm:$0xf] %v981
      %990 = vst [vmem:[%s350 + $0xc] sm:$0xf] %v982
      %991 = vst [vmem:[%s350 + $0x10] sm:$0xf] %v983
      %992 = vst [vmem:[%s350 + $0x14] sm:$0xf] %v984
      %993 = vst [vmem:[%s350 + $0x18] sm:$0xf] %v985
      %994 = vst [vmem:[%s350 + $0x1c] sm:$0xf] %v986
      %s995 = smul.u32 8, %s22
      %p996 = scmp.lt.s32.totalorder %s21, 1
      %s997 = scalar_select %p996, %s21, 1
      %p998 = scmp.lt.s32.totalorder %s995, 7
      %s999 = scalar_select %p998, %s995, 7
      %s1000 = smul.addr %s997, 8
      %s1001 = sadd.s32 %s999, %s1000
      %s1002 = smul.addr %s1001, 4
      %s1003 = scalar_lea.vmem %s4, %s1002
      %p1004 = scmp.lt.s32.totalorder %s21, 1
      %s1005 = scalar_select %p1004, %s21, 1
      %p1006 = scmp.lt.s32.totalorder %s22, 0
      %s1007 = scalar_select %p1006, %s22, 0
      %s1008 = sadd.s32 %s1007, %s1005
      %s1009 = smul.addr %s1008, 2
      %s1010 = scalar_lea.vmem %s5, %s1009
      // Predicated region
      $region37: #{conv_block_forward.1} parent=35 // pred_check
        %p1011 = pneg %p151
      $region38: #{conv_block_forward.1} parent=35 // pred_check_branch
        %1013 = sbr.rel (%p1011) target = $region40
      $region39: #{conv_block_forward.1} parent=35 // pred_region
        %s1014 = smul.u32 8, %s22
      $region40: #{conv_block_forward.1} parent=35 // pred_fallthru
        _
      // Predicated region
      $region41: #{conv_block_forward.1} parent=35 // pred_check
        %p1015 = pneg %p179
      $region42: #{conv_block_forward.1} parent=35 // pred_check_branch
        %1017 = sbr.rel (%p1015) target = $region44
      $region43: #{conv_block_forward.1} parent=35 // pred_region
        _
      $region44: #{conv_block_forward.1} parent=35 // pred_fallthru
        _
    $region36: #{conv_block_forward.1} parent=5 // pred_fallthru
      _
    %p1018 = scmp.le.s32.totalorder 2, %s12
    // Predicated region
    $region45: #{conv_block_forward.1} parent=5 // pred_check
      %p1019 = pneg %p1018
    $region46: #{conv_block_forward.1} parent=5 // pred_check_branch
      %1021 = sbr.rel (%p1019) target = $region48
    $region47: #{conv_block_forward.1} parent=5 // pred_region
      %s1022 = ssub.s32 %s12, 2
      // Predicated region
      $region49: #{conv_block_forward.1} parent=47 // pred_check
        %p1023 = pneg %p157
      $region50: #{conv_block_forward.1} parent=47 // pred_check_branch
        %1025 = sbr.rel (%p1023) target = $region52
      $region51: #{conv_block_forward.1} parent=47 // pred_region
        %s1026 = smul.u32 8, %s24
        %p1027 = scmp.lt.s32.totalorder %s23, 1
        %s1028 = scalar_select %p1027, %s23, 1
        %p1029 = scmp.lt.s32.totalorder %s1026, 7
        %s1030 = scalar_select %p1029, %s1026, 7
        %s1031 = smul.addr %s1028, 8
        %s1032 = sadd.s32 %s1030, %s1031
        %s1033 = smul.addr %s1032, 4
        %s1034 = scalar_lea.vmem %s4, %s1033
      $region52: #{conv_block_forward.1} parent=47 // pred_fallthru
        _
      // Predicated region
      $region53: #{conv_block_forward.1} parent=47 // pred_check
        %p1035 = pneg %p185
      $region54: #{conv_block_forward.1} parent=47 // pred_check_branch
        %1037 = sbr.rel (%p1035) target = $region56
      $region55: #{conv_block_forward.1} parent=47 // pred_region
        %p1038 = scmp.lt.s32.totalorder %s23, 1
        %s1039 = scalar_select %p1038, %s23, 1
        %p1040 = scmp.lt.s32.totalorder %s24, 0
        %s1041 = scalar_select %p1040, %s24, 0
        %s1042 = sadd.s32 %s1041, %s1039
        %s1043 = smul.addr %s1042, 2
        %s1044 = scalar_lea.vmem %s5, %s1043
      $region56: #{conv_block_forward.1} parent=47 // pred_fallthru
        _
    $region48: #{conv_block_forward.1} parent=5 // pred_fallthru
      _
  $region6: #{conv_block_forward.1} parent=0 // loop_footer
    %s16 = sadd.s32 1, %s12
  $region7: #{conv_block_forward.1} parent=0 // loop_footer_branch
    %11 = sbr.rel target = $region3
  $region8: #{conv_block_forward.1} parent=0 // loop_exit
    _

</llo_original>
